<compile_context>
chip_gen: v7x
topology: tpu7x:2x2x1
jax: 0.10.0
libtpu: 0.0.40
codegen_flags: <defaults>
</compile_context>

<pallas_src>
import functools

import jax
import jax.numpy as jnp
from jax import lax
from jax.experimental import pallas as pl
from jax.experimental.pallas import tpu as pltpu


def _contrastive_loss_kernel(scale_ref, img_ref, txt_ref, t2i_ref, i2t_ref,
                             *, batch, tile_b):
    """One batch tile of the contrastive loss.

    scale_ref : SMEM (1,) f32          -- logit scale (scalar prefetch)
    img_ref   : VMEM (TB, N, Dp) bf16  -- image candidates (D zero-padded)
    txt_ref   : VMEM (TB, M, Dp) bf16  -- text  candidates (D zero-padded)
    t2i_ref   : VMEM (1, 1) f32        -- accumulated / finalized t2i CE loss
    i2t_ref   : VMEM (1, 1) f32        -- accumulated / finalized i2t CE loss
    """
    b = pl.program_id(0)
    nb = pl.num_programs(0)

    @pl.when(b == 0)
    def _init():
        t2i_ref[...] = jnp.zeros_like(t2i_ref)
        i2t_ref[...] = jnp.zeros_like(i2t_ref)

    scale = scale_ref[0]
    eps2 = jnp.float32(1e-24)  # (F.normalize eps = 1e-12) ** 2

    img = img_ref[...]  # bf16 [TB, N, Dp]
    txt = txt_ref[...]  # bf16 [TB, M, Dp]

    # L2 normalize: sum-of-squares in f32, rsqrt on the EUP (frees the VALU).
    img_f = img.astype(jnp.float32)
    txt_f = txt.astype(jnp.float32)
    inv_img = lax.rsqrt(jnp.maximum(jnp.sum(img_f * img_f, axis=-1, keepdims=True), eps2))
    inv_txt = lax.rsqrt(jnp.maximum(jnp.sum(txt_f * txt_f, axis=-1, keepdims=True), eps2))
    # Store normalized features in bf16 once: half-precision matmul inputs,
    # f32 accumulation below (matches the .half() matmul intent).
    img_n = (img_f * inv_img).astype(jnp.bfloat16)
    txt_n = (txt_f * inv_txt).astype(jnp.bfloat16)

    # Batched D-contraction on the MXU (bf16 in, f32 accumulate).
    # logit_t2i[b, n] = <txt_n[b, 0, :], img_n[b, n, :]>
    logit_t2i = jnp.einsum("bqd,bkd->bqk", txt_n[:, 0:1, :], img_n,
                           preferred_element_type=jnp.float32)[:, 0, :]  # [TB, N]
    # logit_i2t[b, m] = <img_n[b, 0, :], txt_n[b, m, :]>
    logit_i2t = jnp.einsum("bqd,bkd->bqk", img_n[:, 0:1, :], txt_n,
                           preferred_element_type=jnp.float32)[:, 0, :]  # [TB, M]

    # Mask batch rows that are only padding (when B % TB != 0).
    row = lax.broadcasted_iota(jnp.int32, (tile_b, 1), 0) + b * tile_b
    valid = row < batch  # [TB, 1] bool

    def masked_nll_sum(logits):
        # CrossEntropyLoss(logits * scale, target=0), summed over valid rows.
        z = logits * scale
        m = jnp.max(z, axis=-1, keepdims=True)
        lse = jnp.log(jnp.sum(jnp.exp(z - m), axis=-1, keepdims=True)) + m  # [TB, 1]
        nll = lse - z[:, 0:1]                                               # [TB, 1]
        return jnp.sum(jnp.where(valid, nll, 0.0))

    t2i_ref[...] += jnp.reshape(masked_nll_sum(logit_t2i), (1, 1))
    i2t_ref[...] += jnp.reshape(masked_nll_sum(logit_i2t), (1, 1))

    @pl.when(b == nb - 1)
    def _finalize():
        inv_b = jnp.float32(1.0 / batch)
        t2i_ref[...] = t2i_ref[...] * inv_b
        i2t_ref[...] = i2t_ref[...] * inv_b


def contrastive_loss(all_img, all_txt, logit_scale=None, temperature=1.0, tile_b=8):
    """Returns (loss_contrast_t2i, loss_contrast_i2t) as f32 scalars."""
    scale = (1.0 / temperature) if logit_scale is None else logit_scale
    scale_arr = jnp.asarray([scale], dtype=jnp.float32)

    B, N, D = all_img.shape
    _, M, _ = all_txt.shape

    # `.half()` analog on TPU.
    img = all_img.astype(jnp.bfloat16)
    txt = all_txt.astype(jnp.bfloat16)

    # Lane-align the feature dim (zero padding preserves norms / dot products).
    Dp = ((D + 127) // 128) * 128
    if Dp != D:
        img = jnp.pad(img, ((0, 0), (0, 0), (0, Dp - D)))
        txt = jnp.pad(txt, ((0, 0), (0, 0), (0, Dp - D)))

    # Batch tiling: grid over B so the pipeline double-buffers HBM->VMEM DMA.
    tb = max(1, min(tile_b, B))
    nb = pl.cdiv(B, tb)
    Bp = nb * tb
    if Bp != B:
        img = jnp.pad(img, ((0, Bp - B), (0, 0), (0, 0)))
        txt = jnp.pad(txt, ((0, Bp - B), (0, 0), (0, 0)))

    kernel = functools.partial(_contrastive_loss_kernel, batch=B, tile_b=tb)

    t2i, i2t = pl.pallas_call(
        kernel,
        out_shape=(
            jax.ShapeDtypeStruct((1, 1), jnp.float32),
            jax.ShapeDtypeStruct((1, 1), jnp.float32),
        ),
        grid_spec=pltpu.PrefetchScalarGridSpec(
            num_scalar_prefetch=1,  # logit scale lives in SMEM
            grid=(nb,),
            in_specs=[
                pl.BlockSpec((tb, N, Dp), lambda b, s: (b, 0, 0)),
                pl.BlockSpec((tb, M, Dp), lambda b, s: (b, 0, 0)),
            ],
            out_specs=(
                # Constant index_map -> outputs stay resident in VMEM across the
                # grid (accumulators); written back to HBM once at the end.
                pl.BlockSpec((1, 1), lambda b, s: (0, 0)),
                pl.BlockSpec((1, 1), lambda b, s: (0, 0)),
            ),
        ),
        compiler_params=pltpu.CompilerParams(
            # Sequential accumulation across batch tiles -> "arbitrary".
            dimension_semantics=("arbitrary",),
        ),
    )(scale_arr, img, txt)
    return t2i[0, 0], i2t[0, 0]


def _reference(all_img, all_txt, logit_scale=None, temperature=1.0):
    # pure-JAX reference (f32) for a sanity check
    scale = (1.0 / temperature) if logit_scale is None else logit_scale
    img = all_img.astype(jnp.float32)
    txt = all_txt.astype(jnp.float32)
    eps = 1e-12
    img = img / jnp.maximum(jnp.linalg.norm(img, axis=-1, keepdims=True), eps)
    txt = txt / jnp.maximum(jnp.linalg.norm(txt, axis=-1, keepdims=True), eps)
    l_t2i = jnp.einsum("bd,bnd->bn", txt[:, 0, :], img) * scale
    l_i2t = jnp.einsum("bd,bmd->bm", img[:, 0, :], txt) * scale

    def ce0(z):
        return jnp.mean(jax.nn.logsumexp(z, axis=-1) - z[:, 0])

    return ce0(l_t2i), ce0(l_i2t)


if __name__ == "__main__":
    key = jax.random.PRNGKey(0)
    k1, k2, k3, k4 = jax.random.split(key, 4)

    # Case 1: shapes matching the module's intent (small).
    B, N, M, D = 2, 8, 8, 32
    all_img = jax.random.normal(k1, (B, N, D), dtype=jnp.float32)
    all_txt = jax.random.normal(k2, (B, M, D), dtype=jnp.float32)

    loss_t2i, loss_i2t = contrastive_loss(all_img, all_txt, temperature=1.0)
    jax.block_until_ready((loss_t2i, loss_i2t))
    ref_t2i, ref_i2t = _reference(all_img, all_txt, temperature=1.0)
    assert abs(float(loss_t2i) - float(ref_t2i)) < 2e-2, (loss_t2i, ref_t2i)
    assert abs(float(loss_i2t) - float(ref_i2t)) < 2e-2, (loss_i2t, ref_i2t)

    # Case 2: B not a multiple of the batch tile + N != M (exercises padding/masking).
    B2, N2, M2, D2 = 5, 4, 6, 32
    img2 = jax.random.normal(k3, (B2, N2, D2), dtype=jnp.float32)
    txt2 = jax.random.normal(k4, (B2, M2, D2), dtype=jnp.float32)
    l2_t2i, l2_i2t = contrastive_loss(img2, txt2, temperature=0.5, tile_b=2)
    jax.block_until_ready((l2_t2i, l2_i2t))
    r2_t2i, r2_i2t = _reference(img2, txt2, temperature=0.5)
    assert abs(float(l2_t2i) - float(r2_t2i)) < 2e-2, (l2_t2i, r2_t2i)
    assert abs(float(l2_i2t) - float(r2_i2t)) < 2e-2, (l2_i2t, r2_i2t)

    print("KERNEL_OK")
</pallas_src>

<mosaic_0001>
module attributes {stable_mosaic.version = 11 : i64} {
  func.func @_contrastive_loss_kernel(%arg0: i32, %arg1: memref<1xf32, #tpu.memory_space<smem>>, %arg2: memref<2x8x128xbf16, #tpu.memory_space<vmem>>, %arg3: memref<2x8x128xbf16, #tpu.memory_space<vmem>>, %arg4: memref<1x1xf32, #tpu.memory_space<vmem>>, %arg5: memref<1x1xf32, #tpu.memory_space<vmem>>) attributes {dimension_semantics = [#tpu.dimension_semantics<arbitrary>], iteration_bounds = array<i64: 1>, scalar_prefetch = 1 : i64, scratch_operands = 0 : i64, tpu.core_type = #tpu.core_type<tc>, window_params = [{transform_indices = @transform_0, window_bounds = array<i64: 2, 8, 128>}, {transform_indices = @transform_1, window_bounds = array<i64: 2, 8, 128>}, {pipeline_mode = #tpu.pipeline_mode<synchronous>, transform_indices = @transform_2, window_bounds = array<i64: 1, 1>}, {pipeline_mode = #tpu.pipeline_mode<synchronous>, transform_indices = @transform_3, window_bounds = array<i64: 1, 1>}]} {
    %c0_i32 = arith.constant 0 : i32
    %0 = arith.cmpi eq, %arg0, %c0_i32 : i32
    %1 = arith.extui %0 : i1 to i32
    %c0_i32_0 = arith.constant 0 : i32
    %2 = arith.cmpi ne, %1, %c0_i32_0 : i32
    scf.if %2 {
      %cst_31 = arith.constant 0.000000e+00 : f32
      %87 = vector.broadcast %cst_31 : f32 to vector<1x1xf32>
      %c0_32 = arith.constant 0 : index
      %c0_33 = arith.constant 0 : index
      %88 = vector.load %arg4[%c0_32, %c0_33] : memref<1x1xf32, #tpu.memory_space<vmem>>, vector<1x1xf32>
      tpu.vector_store %arg4[%c0_32, %c0_33], %87 {strides = array<i32>} : memref<1x1xf32, #tpu.memory_space<vmem>>, vector<1x1xf32>,
      %cst_34 = arith.constant 0.000000e+00 : f32
      %89 = vector.broadcast %cst_34 : f32 to vector<1x1xf32>
      %c0_35 = arith.constant 0 : index
      %c0_36 = arith.constant 0 : index
      %90 = vector.load %arg5[%c0_35, %c0_36] : memref<1x1xf32, #tpu.memory_space<vmem>>, vector<1x1xf32>
      tpu.vector_store %arg5[%c0_35, %c0_36], %89 {strides = array<i32>} : memref<1x1xf32, #tpu.memory_space<vmem>>, vector<1x1xf32>,
    } else {
    }
    %c0 = arith.constant 0 : index
    %3 = memref.load %arg1[%c0] : memref<1xf32, #tpu.memory_space<smem>>
    %c0_1 = arith.constant 0 : index
    %c0_2 = arith.constant 0 : index
    %c0_3 = arith.constant 0 : index
    %4 = vector.load %arg2[%c0_1, %c0_2, %c0_3] : memref<2x8x128xbf16, #tpu.memory_space<vmem>>, vector<2x8x128xbf16>
    %c0_4 = arith.constant 0 : index
    %c0_5 = arith.constant 0 : index
    %c0_6 = arith.constant 0 : index
    %5 = vector.load %arg3[%c0_4, %c0_5, %c0_6] : memref<2x8x128xbf16, #tpu.memory_space<vmem>>, vector<2x8x128xbf16>
    %6 = arith.extf %4 : vector<2x8x128xbf16> to vector<2x8x128xf32>
    %7 = arith.extf %5 : vector<2x8x128xbf16> to vector<2x8x128xf32>
    %8 = arith.mulf %6, %6 : vector<2x8x128xf32>
    %cst = arith.constant dense<0.000000e+00> : vector<2x8xf32>
    %9 = vector.multi_reduction <add>, %8, %cst [2] : vector<2x8x128xf32> to vector<2x8xf32>
    %10 = vector.shape_cast %9 : vector<2x8xf32> to vector<2x8x1xf32>
    %cst_7 = arith.constant 1.000000e-24 : f32
    %11 = vector.broadcast %cst_7 : f32 to vector<2x8x1xf32>
    %12 = arith.maximumf %10, %11 : vector<2x8x1xf32>
    %13 = math.rsqrt %12 : vector<2x8x1xf32>
    %14 = arith.mulf %7, %7 : vector<2x8x128xf32>
    %cst_8 = arith.constant dense<0.000000e+00> : vector<2x8xf32>
    %15 = vector.multi_reduction <add>, %14, %cst_8 [2] : vector<2x8x128xf32> to vector<2x8xf32>
    %16 = vector.shape_cast %15 : vector<2x8xf32> to vector<2x8x1xf32>
    %cst_9 = arith.constant 1.000000e-24 : f32
    %17 = vector.broadcast %cst_9 : f32 to vector<2x8x1xf32>
    %18 = arith.maximumf %16, %17 : vector<2x8x1xf32>
    %19 = math.rsqrt %18 : vector<2x8x1xf32>
    %20 = vector.broadcast %13 : vector<2x8x1xf32> to vector<2x8x128xf32>
    %21 = arith.mulf %6, %20 : vector<2x8x128xf32>
    %22 = arith.truncf %21 : vector<2x8x128xf32> to vector<2x8x128xbf16>
    %23 = vector.broadcast %19 : vector<2x8x1xf32> to vector<2x8x128xf32>
    %24 = arith.mulf %7, %23 : vector<2x8x128xf32>
    %25 = arith.truncf %24 : vector<2x8x128xf32> to vector<2x8x128xbf16>
    %26 = vector.extract_strided_slice %25 {offsets = [0, 0, 0], sizes = [2, 1, 128], strides = [1, 1, 1]} : vector<2x8x128xbf16> to vector<2x1x128xbf16>
    "tpu.trace_start"() <{level = 10 : i32, message = "bqd,bkd->bqk"}> : () -> ()
    %cst_10 = arith.constant dense<0.000000e+00> : vector<2x1x8xf32>
    %27 = tpu.matmul %26, %22, %cst_10 {dimension_numbers = #tpu.dot_dimension_numbers<[2], [2], [1], [1], [0, 0, 0, 1, 1, 1], [0], [0]>} : vector<2x1x128xbf16>, vector<2x8x128xbf16>, vector<2x1x8xf32> -> vector<2x1x8xf32>
    "tpu.trace_stop"() : () -> ()
    %28 = vector.shape_cast %27 : vector<2x1x8xf32> to vector<2x8xf32>
    %29 = vector.extract_strided_slice %22 {offsets = [0, 0, 0], sizes = [2, 1, 128], strides = [1, 1, 1]} : vector<2x8x128xbf16> to vector<2x1x128xbf16>
    "tpu.trace_start"() <{level = 10 : i32, message = "bqd,bkd->bqk"}> : () -> ()
    %cst_11 = arith.constant dense<0.000000e+00> : vector<2x1x8xf32>
    %30 = tpu.matmul %29, %25, %cst_11 {dimension_numbers = #tpu.dot_dimension_numbers<[2], [2], [1], [1], [0, 0, 0, 1, 1, 1], [0], [0]>} : vector<2x1x128xbf16>, vector<2x8x128xbf16>, vector<2x1x8xf32> -> vector<2x1x8xf32>
    "tpu.trace_stop"() : () -> ()
    %31 = vector.shape_cast %30 : vector<2x1x8xf32> to vector<2x8xf32>
    %32 = tpu.iota {dimensions = array<i32: 0>} : vector<2x1xi32>
    %c2_i32 = arith.constant 2 : i32
    %33 = arith.muli %arg0, %c2_i32 : i32
    %34 = vector.broadcast %33 : i32 to vector<2x1xi32>
    %35 = arith.addi %32, %34 : vector<2x1xi32>
    %c2_i32_12 = arith.constant 2 : i32
    %36 = vector.broadcast %c2_i32_12 : i32 to vector<2x1xi32>
    %37 = arith.cmpi slt, %35, %36 : vector<2x1xi32>
    %c0_13 = arith.constant 0 : index
    %c0_14 = arith.constant 0 : index
    %38 = vector.load %arg4[%c0_13, %c0_14] : memref<1x1xf32, #tpu.memory_space<vmem>>, vector<1x1xf32>
    %39 = vector.broadcast %3 : f32 to vector<2x8xf32>
    %40 = arith.mulf %28, %39 : vector<2x8xf32>
    %cst_15 = arith.constant dense<0xFF800000> : vector<2xf32>
    %41 = vector.multi_reduction <maximumf>, %40, %cst_15 [1] : vector<2x8xf32> to vector<2xf32>
    %42 = vector.shape_cast %41 : vector<2xf32> to vector<2x1xf32>
    %43 = vector.broadcast %42 : vector<2x1xf32> to vector<2x8xf32>
    %44 = arith.subf %40, %43 : vector<2x8xf32>
    %45 = math.exp %44 : vector<2x8xf32>
    %cst_16 = arith.constant dense<0.000000e+00> : vector<2xf32>
    %46 = vector.multi_reduction <add>, %45, %cst_16 [1] : vector<2x8xf32> to vector<2xf32>
    %47 = vector.shape_cast %46 : vector<2xf32> to vector<2x1xf32>
    %48 = math.log %47 : vector<2x1xf32>
    %49 = arith.addf %48, %42 : vector<2x1xf32>
    %50 = vector.extract_strided_slice %40 {offsets = [0, 0], sizes = [2, 1], strides = [1, 1]} : vector<2x8xf32> to vector<2x1xf32>
    %51 = arith.subf %49, %50 : vector<2x1xf32>
    %cst_17 = arith.constant 0.000000e+00 : f32
    %52 = vector.broadcast %cst_17 : f32 to vector<2x1xf32>
    %53 = arith.select %37, %51, %52 : vector<2x1xi1>, vector<2x1xf32>
    %54 = vector.shape_cast %53 : vector<2x1xf32> to vector<1x2x1xf32>
    %cst_18 = arith.constant dense<0.000000e+00> : vector<1xf32>
    %55 = vector.multi_reduction <add>, %54, %cst_18 [1, 2] : vector<1x2x1xf32> to vector<1xf32>
    %56 = vector.shape_cast %55 : vector<1xf32> to vector<1x1x1xf32>
    %57 = vector.extract %56[0, 0, 0] : f32 from vector<1x1x1xf32>
    %58 = vector.broadcast %57 : f32 to vector<1x1xf32>
    %59 = arith.addf %38, %58 : vector<1x1xf32>
    %c0_19 = arith.constant 0 : index
    %c0_20 = arith.constant 0 : index
    %60 = vector.load %arg4[%c0_19, %c0_20] : memref<1x1xf32, #tpu.memory_space<vmem>>, vector<1x1xf32>
    tpu.vector_store %arg4[%c0_19, %c0_20], %59 {strides = array<i32>} : memref<1x1xf32, #tpu.memory_space<vmem>>, vector<1x1xf32>,
    %c0_21 = arith.constant 0 : index
    %c0_22 = arith.constant 0 : index
    %61 = vector.load %arg5[%c0_21, %c0_22] : memref<1x1xf32, #tpu.memory_space<vmem>>, vector<1x1xf32>
    %62 = vector.broadcast %3 : f32 to vector<2x8xf32>
    %63 = arith.mulf %31, %62 : vector<2x8xf32>
    %cst_23 = arith.constant dense<0xFF800000> : vector<2xf32>
    %64 = vector.multi_reduction <maximumf>, %63, %cst_23 [1] : vector<2x8xf32> to vector<2xf32>
    %65 = vector.shape_cast %64 : vector<2xf32> to vector<2x1xf32>
    %66 = vector.broadcast %65 : vector<2x1xf32> to vector<2x8xf32>
    %67 = arith.subf %63, %66 : vector<2x8xf32>
    %68 = math.exp %67 : vector<2x8xf32>
    %cst_24 = arith.constant dense<0.000000e+00> : vector<2xf32>
    %69 = vector.multi_reduction <add>, %68, %cst_24 [1] : vector<2x8xf32> to vector<2xf32>
    %70 = vector.shape_cast %69 : vector<2xf32> to vector<2x1xf32>
    %71 = math.log %70 : vector<2x1xf32>
    %72 = arith.addf %71, %65 : vector<2x1xf32>
    %73 = vector.extract_strided_slice %63 {offsets = [0, 0], sizes = [2, 1], strides = [1, 1]} : vector<2x8xf32> to vector<2x1xf32>
    %74 = arith.subf %72, %73 : vector<2x1xf32>
    %cst_25 = arith.constant 0.000000e+00 : f32
    %75 = vector.broadcast %cst_25 : f32 to vector<2x1xf32>
    %76 = arith.select %37, %74, %75 : vector<2x1xi1>, vector<2x1xf32>
    %77 = vector.shape_cast %76 : vector<2x1xf32> to vector<1x2x1xf32>
    %cst_26 = arith.constant dense<0.000000e+00> : vector<1xf32>
    %78 = vector.multi_reduction <add>, %77, %cst_26 [1, 2] : vector<1x2x1xf32> to vector<1xf32>
    %79 = vector.shape_cast %78 : vector<1xf32> to vector<1x1x1xf32>
    %80 = vector.extract %79[0, 0, 0] : f32 from vector<1x1x1xf32>
    %81 = vector.broadcast %80 : f32 to vector<1x1xf32>
    %82 = arith.addf %61, %81 : vector<1x1xf32>
    %c0_27 = arith.constant 0 : index
    %c0_28 = arith.constant 0 : index
    %83 = vector.load %arg5[%c0_27, %c0_28] : memref<1x1xf32, #tpu.memory_space<vmem>>, vector<1x1xf32>
    tpu.vector_store %arg5[%c0_27, %c0_28], %82 {strides = array<i32>} : memref<1x1xf32, #tpu.memory_space<vmem>>, vector<1x1xf32>,
    %c0_i32_29 = arith.constant 0 : i32
    %84 = arith.cmpi eq, %arg0, %c0_i32_29 : i32
    %85 = arith.extui %84 : i1 to i32
    %c0_i32_30 = arith.constant 0 : i32
    %86 = arith.cmpi ne, %85, %c0_i32_30 : i32
    scf.if %86 {
      %c0_31 = arith.constant 0 : index
      %c0_32 = arith.constant 0 : index
      %87 = vector.load %arg4[%c0_31, %c0_32] : memref<1x1xf32, #tpu.memory_space<vmem>>, vector<1x1xf32>
      %cst_33 = arith.constant 5.000000e-01 : f32
      %88 = vector.broadcast %cst_33 : f32 to vector<1x1xf32>
      %89 = arith.mulf %87, %88 : vector<1x1xf32>
      %c0_34 = arith.constant 0 : index
      %c0_35 = arith.constant 0 : index
      %90 = vector.load %arg4[%c0_34, %c0_35] : memref<1x1xf32, #tpu.memory_space<vmem>>, vector<1x1xf32>
      tpu.vector_store %arg4[%c0_34, %c0_35], %89 {strides = array<i32>} : memref<1x1xf32, #tpu.memory_space<vmem>>, vector<1x1xf32>,
      %c0_36 = arith.constant 0 : index
      %c0_37 = arith.constant 0 : index
      %91 = vector.load %arg5[%c0_36, %c0_37] : memref<1x1xf32, #tpu.memory_space<vmem>>, vector<1x1xf32>
      %cst_38 = arith.constant 5.000000e-01 : f32
      %92 = vector.broadcast %cst_38 : f32 to vector<1x1xf32>
      %93 = arith.mulf %91, %92 : vector<1x1xf32>
      %c0_39 = arith.constant 0 : index
      %c0_40 = arith.constant 0 : index
      %94 = vector.load %arg5[%c0_39, %c0_40] : memref<1x1xf32, #tpu.memory_space<vmem>>, vector<1x1xf32>
      tpu.vector_store %arg5[%c0_39, %c0_40], %93 {strides = array<i32>} : memref<1x1xf32, #tpu.memory_space<vmem>>, vector<1x1xf32>,
    } else {
    }
    return
  }
  func.func @transform_0(%arg0: i32, %arg1: memref<1xf32, #tpu.memory_space<smem>>) -> (i32, i32, i32) {
    %c0_i32 = arith.constant 0 : i32
    %c0_i32_0 = arith.constant 0 : i32
    %c0_i32_1 = arith.constant 0 : i32
    return %arg0, %c0_i32, %c0_i32_0 : i32, i32, i32
  }
  func.func @transform_1(%arg0: i32, %arg1: memref<1xf32, #tpu.memory_space<smem>>) -> (i32, i32, i32) {
    %c0_i32 = arith.constant 0 : i32
    %c0_i32_0 = arith.constant 0 : i32
    %c0_i32_1 = arith.constant 0 : i32
    return %arg0, %c0_i32, %c0_i32_0 : i32, i32, i32
  }
  func.func @transform_2(%arg0: i32, %arg1: memref<1xf32, #tpu.memory_space<smem>>) -> (i32, i32) {
    %c0_i32 = arith.constant 0 : i32
    %c0_i32_0 = arith.constant 0 : i32
    %c0_i32_1 = arith.constant 0 : i32
    return %c0_i32, %c0_i32_0 : i32, i32
  }
  func.func @transform_3(%arg0: i32, %arg1: memref<1xf32, #tpu.memory_space<smem>>) -> (i32, i32) {
    %c0_i32 = arith.constant 0 : i32
    %c0_i32_0 = arith.constant 0 : i32
    %c0_i32_1 = arith.constant 0 : i32
    return %c0_i32, %c0_i32_0 : i32, i32
  }
}

</mosaic_0001>

<llo_original>
// kernel: tpu_custom_call.1
$region0: #{tpu_custom_call.1}
  #allocation0 [shape = 'u32[]', space=smem, size = 0x4, offset = 0x4, fixed_abs, tag = 'smem constant byte address 0x4 - core index']
  #allocation1 [shape = 'u32[144,128]{1,0:T(1,128)}', space=vmem, size = 0x12000, scoped, tag = 'internal scratch']
  #allocation2 [shape = 's32[1]{0}', space=sflag, size = 0x4, scoped, tag = 'scoped memory for tpu_custom_call.1']
  #allocation3 [shape = 'f32[1]{0:T(128)S(6)}', space=smem, size = 0x200, scoped, tag = 'prefetched SMEM operand 0']
  %s0 = inlined_call_operand.<no memory space> [shape: f32[1], index: 0, kind: input, shape index: {}]
  %s1 = inlined_call_operand.hbm [shape: bf16[2,8,128], index: 1, kind: input, shape index: {}]
  %s2 = inlined_call_operand.hbm [shape: bf16[2,8,128], index: 2, kind: input, shape index: {}]
  %s3 = inlined_call_operand.hbm [shape: f32[1,1], index: 3, kind: output, shape index: {0}]
  %s4 = inlined_call_operand.hbm [shape: f32[1,1], index: 4, kind: output, shape index: {1}]
  %5 = xla_tuple %s3, %s4
  %s6 = sld [smem:[#allocation0]]
  $region42: #{tpu_custom_call.1} parent=0
    _
  %s8 = ssub.s32 1, %s6
  %s9 = scalar_select 0, %s8, %s6
  %10 = sst [smem:[#allocation3]] %s0
  $region1: #{tpu_custom_call.1} parent=0
    #allocation4 [shape = 'u8[4096]{0}', space=vmem, size = 0x1000, scoped, tag = 'input window, operand 1, single buffered']
    #allocation5 [shape = 's32[1]{0}', space=sflag, size = 0x4, scoped, tag = 'scoped memory for tpu_custom_call.1']
    #allocation6 [shape = 's32[1]{0}', space=sflag, size = 0x4, scoped, tag = 'scoped memory for tpu_custom_call.1']
    #allocation7 [shape = 'u8[4096]{0}', space=vmem, size = 0x1000, scoped, tag = 'input window, operand 2, single buffered']
    #allocation8 [shape = 's32[1]{0}', space=sflag, size = 0x4, scoped, tag = 'scoped memory for tpu_custom_call.1']
    #allocation9 [shape = 'u8[512]{0}', space=vmem, size = 0x400, scoped, tag = 'output window, operand 0, single buffered']
    #allocation10 [shape = 'u8[512]{0}', space=vmem, size = 0x400, scoped, tag = 'output window, operand 1, single buffered']
    #allocation11 [shape = 's32[1]{0}', space=sflag, size = 0x4, scoped, tag = 'scoped memory for tpu_custom_call.1']
    %11 = vsyncpa [#allocation5], 0
    %12 = vsyncpa [#allocation8], 0
    %13 = vsyncpa [#allocation6], 0
    %14 = vsyncpa [#allocation11], 0
    // Predicated region
    $region2: #{tpu_custom_call.1} parent=1 // pred_check
      _
    $region3: #{tpu_custom_call.1} parent=1 // pred_check_branch
      %16 = sbr.rel (0) target = $region5
    $region4: #{tpu_custom_call.1} parent=1 // pred_region
      %s18 = ssub.s32 128, 128
      %19 = vsyncadd [#allocation5], %s18
      %s20 = sshll.u32 [#allocation4], 4
      %s21 = int_to_ptr.vmem [resolvable:$true] %s20
      %26 = dma.hbm_to_vmem [thread:$0]  %s1, 128, %s21, [#allocation5], 64, 64, 4
    $region5: #{tpu_custom_call.1} parent=1 // pred_fallthru
      _
    // Predicated region
    $region6: #{tpu_custom_call.1} parent=1 // pred_check
      _
    $region7: #{tpu_custom_call.1} parent=1 // pred_check_branch
      %28 = sbr.rel (0) target = $region9
    $region8: #{tpu_custom_call.1} parent=1 // pred_region
      %s30 = ssub.s32 128, 128
      %31 = vsyncadd [#allocation8], %s30
      %s32 = sshll.u32 [#allocation7], 4
      %s33 = int_to_ptr.vmem [resolvable:$true] %s32
      %38 = dma.hbm_to_vmem [thread:$0]  %s2, 128, %s33, [#allocation8], 64, 64, 4
    $region9: #{tpu_custom_call.1} parent=1 // pred_fallthru
      _
    // Predicated region
    $region10: #{tpu_custom_call.1} parent=1 // pred_check
      _
    $region11: #{tpu_custom_call.1} parent=1 // pred_check_branch
      %40 = sbr.rel (0) target = $region13
    $region12: #{tpu_custom_call.1} parent=1 // pred_region
      %41 = dma.done [#allocation5], 128
    $region13: #{tpu_custom_call.1} parent=1 // pred_fallthru
      _
    // Predicated region
    $region14: #{tpu_custom_call.1} parent=1 // pred_check
      _
    $region15: #{tpu_custom_call.1} parent=1 // pred_check_branch
      %43 = sbr.rel (0) target = $region17
    $region16: #{tpu_custom_call.1} parent=1 // pred_region
      %44 = dma.done [#allocation8], 128
    $region17: #{tpu_custom_call.1} parent=1 // pred_fallthru
      _
    %p46 = scmp.eq.s32.totalorder 0, 0
    // Predicated region
    $region18: #{tpu_custom_call.1} parent=1 // pred_check
      %p47 = pneg %p46
    $region19: #{tpu_custom_call.1} parent=1 // pred_check_branch
      %49 = sbr.rel (%p47) target = $region21
    $region20: #{tpu_custom_call.1} parent=1 // pred_region
      %vm50 = vcmask 0
      %51 = vst.msk [vmem:[#allocation9] sm:$0x1] %vm50, 0.0
      %52 = vst.msk [vmem:[#allocation10] sm:$0x1] %vm50, 0.0
    $region21: #{tpu_custom_call.1} parent=1 // pred_fallthru
      _
    %s53 = sld [smem:[#allocation3]]
    %v54 = vld [vmem:[#allocation4] sm:$0xf]
    %v55 = vld [vmem:[#allocation4 + $0x4] sm:$0xf]
    %v56 = vld [vmem:[#allocation7] sm:$0xf]
    %v57 = vld [vmem:[#allocation7 + $0x4] sm:$0xf]
    %v58 = vunpack.c.l.bf16 %v54
    %v59 = vunpack.c.l.bf16 %v55
    %v60 = vunpack.c.l.bf16 %v56
    %v61 = vunpack.c.l.bf16 %v57
    %v62 = vmul.f32 %v58, %v58
    %v63 = vmul.f32 %v59, %v59
    %64 = vadd.xlane.f32.xlu0 %v62
    %v65 = vpop.xlane.xlu0 %64
    %66 = vadd.xlane.f32.xlu0 %v63
    %v67 = vpop.xlane.xlu0 %66
    %v68 = vmax.f32 %v65, 1e-24
    %v69 = vmax.f32 %v67, 1e-24
    %v70 = vrsqrt.pop %v68
    %v71 = vrsqrt.pop %v69
    %v72 = vmul.f32 %v60, %v60
    %v73 = vmul.f32 %v61, %v61
    %74 = vadd.xlane.f32.xlu0 %v72
    %v75 = vpop.xlane.xlu0 %74
    %76 = vadd.xlane.f32.xlu0 %v73
    %v77 = vpop.xlane.xlu0 %76
    %v78 = vmax.f32 %v75, 1e-24
    %v79 = vmax.f32 %v77, 1e-24
    %v80 = vrsqrt.pop %v78
    %v81 = vrsqrt.pop %v79
    %v82 = vmul.f32 %v58, %v70
    %v83 = vmul.f32 %v59, %v71
    %v84 = vpack.c.bf16 %v82, %v82
    %v85 = vpack.c.bf16 %v83, %v83
    %v86 = vmul.f32 %v60, %v80
    %v87 = vmul.f32 %v61, %v81
    %v88 = vpack.c.bf16 %v86, %v86
    %v89 = vpack.c.bf16 %v87, %v87
    %90 = vmatprep.subr.bf16.mxu0 0
    %91 = vmatpush1.bf16.xpose.msra.mxu0 %v84
    %92 = vmatprep.subr.bf16.mxu0 0
    %93 = vmatpush1.bf16.xpose.msra.mxu0 0
    %94 = vmatprep.subr.bf16.mxu0 0
    %95 = vmatpush1.bf16.xpose.msra.mxu0 0
    %96 = vmatprep.subr.bf16.mxu0 0
    %97 = vmatpush1.bf16.xpose.msra.mxu0 0
    %98 = vmatprep.subr.bf16.mxu0 0
    %99 = vmatpush1.bf16.xpose.msra.mxu0 0
    %100 = vmatprep.subr.bf16.mxu0 0
    %101 = vmatpush1.bf16.xpose.msra.mxu0 0
    %102 = vmatprep.subr.bf16.mxu0 0
    %103 = vmatpush1.bf16.xpose.msra.mxu0 0
    %104 = vmatprep.subr.bf16.mxu0 0
    %105 = vmatpush1.bf16.xpose.msra.mxu0 0
    %106 = vmatprep.subr.bf16.mxu0 0
    %107 = vmatpush1.bf16.xpose.msra.mxu0 0
    %108 = vmatprep.subr.bf16.mxu0 0
    %109 = vmatpush1.bf16.xpose.msra.mxu0 0
    %110 = vmatprep.subr.bf16.mxu0 0
    %111 = vmatpush1.bf16.xpose.msra.mxu0 0
    %112 = vmatprep.subr.bf16.mxu0 0
    %113 = vmatpush1.bf16.xpose.msra.mxu0 0
    %114 = vmatprep.subr.bf16.mxu0 0
    %115 = vmatpush1.bf16.xpose.msra.mxu0 0
    %116 = vmatprep.subr.bf16.mxu0 0
    %117 = vmatpush1.bf16.xpose.msra.mxu0 0
    %118 = vmatprep.subr.bf16.mxu0 0
    %119 = vmatpush1.bf16.xpose.msra.mxu0 0
    %120 = vmatprep.subr.bf16.mxu0 0
    %121 = vmatpush1.bf16.xpose.msra.mxu0 0
    %122 = vmatprep.mubr.bf16.mxu0 0
    %123 = vmatmul.mubr.bf16.gmra.mrb[0].mxu0 %v88
    %v124 = vpop.f32.mrb[0].mxu0
    %v125 = vadd.f32 0.0, %v124
    %v126 = vpop.f32.mrb[0].mxu0
    %v127 = vpop.f32.mrb[0].mxu0
    %v128 = vpop.f32.mrb[0].mxu0
    %129 = vdwg.mxu0
    %130 = vmatprep.subr.bf16.mxu0 0
    %131 = vmatpush1.bf16.xpose.msra.mxu0 %v85
    %132 = vmatprep.subr.bf16.mxu0 0
    %133 = vmatpush1.bf16.xpose.msra.mxu0 0
    %134 = vmatprep.subr.bf16.mxu0 0
    %135 = vmatpush1.bf16.xpose.msra.mxu0 0
    %136 = vmatprep.subr.bf16.mxu0 0
    %137 = vmatpush1.bf16.xpose.msra.mxu0 0
    %138 = vmatprep.subr.bf16.mxu0 0
    %139 = vmatpush1.bf16.xpose.msra.mxu0 0
    %140 = vmatprep.subr.bf16.mxu0 0
    %141 = vmatpush1.bf16.xpose.msra.mxu0 0
    %142 = vmatprep.subr.bf16.mxu0 0
    %143 = vmatpush1.bf16.xpose.msra.mxu0 0
    %144 = vmatprep.subr.bf16.mxu0 0
    %145 = vmatpush1.bf16.xpose.msra.mxu0 0
    %146 = vmatprep.subr.bf16.mxu0 0
    %147 = vmatpush1.bf16.xpose.msra.mxu0 0
    %148 = vmatprep.subr.bf16.mxu0 0
    %149 = vmatpush1.bf16.xpose.msra.mxu0 0
    %150 = vmatprep.subr.bf16.mxu0 0
    %151 = vmatpush1.bf16.xpose.msra.mxu0 0
    %152 = vmatprep.subr.bf16.mxu0 0
    %153 = vmatpush1.bf16.xpose.msra.mxu0 0
    %154 = vmatprep.subr.bf16.mxu0 0
    %155 = vmatpush1.bf16.xpose.msra.mxu0 0
    %156 = vmatprep.subr.bf16.mxu0 0
    %157 = vmatpush1.bf16.xpose.msra.mxu0 0
    %158 = vmatprep.subr.bf16.mxu0 0
    %159 = vmatpush1.bf16.xpose.msra.mxu0 0
    %160 = vmatprep.subr.bf16.mxu0 0
    %161 = vmatpush1.bf16.xpose.msra.mxu0 0
    %162 = vmatprep.mubr.bf16.mxu0 0
    %163 = vmatmul.mubr.bf16.gmra.mrb[0].mxu0 %v89
    %v164 = vpop.f32.mrb[0].mxu0
    %v165 = vadd.f32 0.0, %v164
    %v166 = vpop.f32.mrb[0].mxu0
    %v167 = vpop.f32.mrb[0].mxu0
    %v168 = vpop.f32.mrb[0].mxu0
    %169 = vdwg.mxu0
    %170 = vmatprep.subr.bf16.mxu0 0
    %171 = vmatpush1.bf16.xpose.msra.mxu0 %v88
    %172 = vmatprep.subr.bf16.mxu0 0
    %173 = vmatpush1.bf16.xpose.msra.mxu0 0
    %174 = vmatprep.subr.bf16.mxu0 0
    %175 = vmatpush1.bf16.xpose.msra.mxu0 0
    %176 = vmatprep.subr.bf16.mxu0 0
    %177 = vmatpush1.bf16.xpose.msra.mxu0 0
    %178 = vmatprep.subr.bf16.mxu0 0
    %179 = vmatpush1.bf16.xpose.msra.mxu0 0
    %180 = vmatprep.subr.bf16.mxu0 0
    %181 = vmatpush1.bf16.xpose.msra.mxu0 0
    %182 = vmatprep.subr.bf16.mxu0 0
    %183 = vmatpush1.bf16.xpose.msra.mxu0 0
    %184 = vmatprep.subr.bf16.mxu0 0
    %185 = vmatpush1.bf16.xpose.msra.mxu0 0
    %186 = vmatprep.subr.bf16.mxu0 0
    %187 = vmatpush1.bf16.xpose.msra.mxu0 0
    %188 = vmatprep.subr.bf16.mxu0 0
    %189 = vmatpush1.bf16.xpose.msra.mxu0 0
    %190 = vmatprep.subr.bf16.mxu0 0
    %191 = vmatpush1.bf16.xpose.msra.mxu0 0
    %192 = vmatprep.subr.bf16.mxu0 0
    %193 = vmatpush1.bf16.xpose.msra.mxu0 0
    %194 = vmatprep.subr.bf16.mxu0 0
    %195 = vmatpush1.bf16.xpose.msra.mxu0 0
    %196 = vmatprep.subr.bf16.mxu0 0
    %197 = vmatpush1.bf16.xpose.msra.mxu0 0
    %198 = vmatprep.subr.bf16.mxu0 0
    %199 = vmatpush1.bf16.xpose.msra.mxu0 0
    %200 = vmatprep.subr.bf16.mxu0 0
    %201 = vmatpush1.bf16.xpose.msra.mxu0 0
    %202 = vmatprep.mubr.bf16.mxu0 0
    %203 = vmatmul.mubr.bf16.gmra.mrb[0].mxu0 %v84
    %v204 = vpop.f32.mrb[0].mxu0
    %v205 = vadd.f32 0.0, %v204
    %v206 = vpop.f32.mrb[0].mxu0
    %v207 = vpop.f32.mrb[0].mxu0
    %v208 = vpop.f32.mrb[0].mxu0
    %209 = vdwg.mxu0
    %210 = vmatprep.subr.bf16.mxu0 0
    %211 = vmatpush1.bf16.xpose.msra.mxu0 %v89
    %212 = vmatprep.subr.bf16.mxu0 0
    %213 = vmatpush1.bf16.xpose.msra.mxu0 0
    %214 = vmatprep.subr.bf16.mxu0 0
    %215 = vmatpush1.bf16.xpose.msra.mxu0 0
    %216 = vmatprep.subr.bf16.mxu0 0
    %217 = vmatpush1.bf16.xpose.msra.mxu0 0
    %218 = vmatprep.subr.bf16.mxu0 0
    %219 = vmatpush1.bf16.xpose.msra.mxu0 0
    %220 = vmatprep.subr.bf16.mxu0 0
    %221 = vmatpush1.bf16.xpose.msra.mxu0 0
    %222 = vmatprep.subr.bf16.mxu0 0
    %223 = vmatpush1.bf16.xpose.msra.mxu0 0
    %224 = vmatprep.subr.bf16.mxu0 0
    %225 = vmatpush1.bf16.xpose.msra.mxu0 0
    %226 = vmatprep.subr.bf16.mxu0 0
    %227 = vmatpush1.bf16.xpose.msra.mxu0 0
    %228 = vmatprep.subr.bf16.mxu0 0
    %229 = vmatpush1.bf16.xpose.msra.mxu0 0
    %230 = vmatprep.subr.bf16.mxu0 0
    %231 = vmatpush1.bf16.xpose.msra.mxu0 0
    %232 = vmatprep.subr.bf16.mxu0 0
    %233 = vmatpush1.bf16.xpose.msra.mxu0 0
    %234 = vmatprep.subr.bf16.mxu0 0
    %235 = vmatpush1.bf16.xpose.msra.mxu0 0
    %236 = vmatprep.subr.bf16.mxu0 0
    %237 = vmatpush1.bf16.xpose.msra.mxu0 0
    %238 = vmatprep.subr.bf16.mxu0 0
    %239 = vmatpush1.bf16.xpose.msra.mxu0 0
    %240 = vmatprep.subr.bf16.mxu0 0
    %241 = vmatpush1.bf16.xpose.msra.mxu0 0
    %242 = vmatprep.mubr.bf16.mxu0 0
    %243 = vmatmul.mubr.bf16.gmra.mrb[0].mxu0 %v85
    %v244 = vpop.f32.mrb[0].mxu0
    %v245 = vadd.f32 0.0, %v244
    %v246 = vpop.f32.mrb[0].mxu0
    %v247 = vpop.f32.mrb[0].mxu0
    %v248 = vpop.f32.mrb[0].mxu0
    %249 = vdwg.mxu0
    %v250 = vlaneseq
    %v251 = vshrl.u32 %v250, 7
    %s252 = smul.u32 0, 2
    %v253 = vstv %s252
    %v254 = vadd.s32 %v251, %v253
    %vm255 = vcmp.lt.s32.totalorder %v254, 2
    %v256 = vld [vmem:[#allocation9] sm:$0x1]
    %v257 = vstv %s53
    %v258 = vmul.f32 %v125, %v257
    %v259 = vmul.f32 %v165, %v257
    %v262 = vrot.slane %v259, 7
    %vm263 = vcmask 1041409
    %v264 = vsel %vm263, %v262, %v258
    %vm266 = vcmask 58368
    %v267 = vsel %vm266, %v264, -inf
    %268 = vmax.xlane.f32.xlu0 %v267
    %v269 = vpop.xlane.xlu0 %268
    %v271 = vrot.slane %v269, 1
    %v274 = vsub.f32 %v258, %v269
    %v275 = vsub.f32 %v259, %v271
    %v276 = vmul.f32 %v274, 1.442695
    %v277 = vpow.pop %v276
    %v278 = vmul.f32 %v275, 1.442695
    %v279 = vpow.pop %v278
    %v282 = vrot.slane %v279, 7
    %v283 = vsel %vm263, %v282, %v277
    %v285 = vsel %vm266, %v283, 0.0
    %286 = vadd.xlane.f32.xlu0 %v285
    %v287 = vpop.xlane.xlu0 %286
    %v288 = vlog2.pop %v287
    %v289 = vmul.f32 %v288, 0.6931472
    %v290 = vadd.f32 %v289, %v269
    %v291 = vsub.f32 %v290, %v264
    %v292 = vsel %vm255, %v291, 0.0
    %vm293 = vcmask 1024
    %v294 = vsel %vm293, %v292, 0.0
    %295 = vadd.xlane.f32.xlu0 %v294
    %v296 = vpop.xlane.xlu0 %295
    %v297 = vrot.slane %v296, 4
    %v298 = vadd.f32 %v296, %v297
    %v299 = vrot.slane %v298, 2
    %v300 = vadd.f32 %v298, %v299
    %v301 = vrot.slane %v300, 1
    %v302 = vadd.f32 %v300, %v301
    %s303 = vtos %v302
    %v304 = vstv %s303
    %v305 = vadd.f32 %v256, %v304
    %vm306 = vcmask 0
    %307 = vst.msk [vmem:[#allocation9] sm:$0x1] %vm306, %v305
    %v308 = vld [vmem:[#allocation10] sm:$0x1]
    %v309 = vmul.f32 %v205, %v257
    %v310 = vmul.f32 %v245, %v257
    %v313 = vrot.slane %v310, 7
    %v314 = vsel %vm263, %v313, %v309
    %v316 = vsel %vm266, %v314, -inf
    %317 = vmax.xlane.f32.xlu0 %v316
    %v318 = vpop.xlane.xlu0 %317
    %v320 = vrot.slane %v318, 1
    %v323 = vsub.f32 %v309, %v318
    %v324 = vsub.f32 %v310, %v320
    %v325 = vmul.f32 %v323, 1.442695
    %v326 = vpow.pop %v325
    %v327 = vmul.f32 %v324, 1.442695
    %v328 = vpow.pop %v327
    %v331 = vrot.slane %v328, 7
    %v332 = vsel %vm263, %v331, %v326
    %v334 = vsel %vm266, %v332, 0.0
    %335 = vadd.xlane.f32.xlu0 %v334
    %v336 = vpop.xlane.xlu0 %335
    %v337 = vlog2.pop %v336
    %v338 = vmul.f32 %v337, 0.6931472
    %v339 = vadd.f32 %v338, %v318
    %v340 = vsub.f32 %v339, %v314
    %v341 = vsel %vm255, %v340, 0.0
    %v342 = vsel %vm293, %v341, 0.0
    %343 = vadd.xlane.f32.xlu0 %v342
    %v344 = vpop.xlane.xlu0 %343
    %v345 = vrot.slane %v344, 4
    %v346 = vadd.f32 %v344, %v345
    %v347 = vrot.slane %v346, 2
    %v348 = vadd.f32 %v346, %v347
    %v349 = vrot.slane %v348, 1
    %v350 = vadd.f32 %v348, %v349
    %s351 = vtos %v350
    %v352 = vstv %s351
    %v353 = vadd.f32 %v308, %v352
    %354 = vst.msk [vmem:[#allocation10] sm:$0x1] %vm306, %v353
    // Predicated region
    $region22: #{tpu_custom_call.1} parent=1 // pred_check
      %p355 = pneg %p46
    $region23: #{tpu_custom_call.1} parent=1 // pred_check_branch
      %357 = sbr.rel (%p355) target = $region25
    $region24: #{tpu_custom_call.1} parent=1 // pred_region
      %v358 = vld [vmem:[#allocation9] sm:$0x1]
      %v359 = vmul.f32 %v358, 0.5
      %360 = vst.msk [vmem:[#allocation9] sm:$0x1] %vm306, %v359
      %v361 = vld [vmem:[#allocation10] sm:$0x1]
      %v362 = vmul.f32 %v361, 0.5
      %363 = vst.msk [vmem:[#allocation10] sm:$0x1] %vm306, %v362
    $region25: #{tpu_custom_call.1} parent=1 // pred_fallthru
      _
    // Predicated region
    $region26: #{tpu_custom_call.1} parent=1 // pred_check
      _
    $region27: #{tpu_custom_call.1} parent=1 // pred_check_branch
      %365 = sbr.rel (0) target = $region29
    $region28: #{tpu_custom_call.1} parent=1 // pred_region
      %s367 = ssub.s32 16, 16
      %368 = vsyncadd [#allocation6], %s367
      %s370 = sshll.u32 [#allocation9], 4
      %s371 = int_to_ptr.vmem [resolvable:$true] %s370
      %373 = dma.vmem_to_hbm [thread:$0]  %s371, 16, %s3, [#allocation6]
    $region29: #{tpu_custom_call.1} parent=1 // pred_fallthru
      _
    // Predicated region
    $region30: #{tpu_custom_call.1} parent=1 // pred_check
      _
    $region31: #{tpu_custom_call.1} parent=1 // pred_check_branch
      %375 = sbr.rel (0) target = $region33
    $region32: #{tpu_custom_call.1} parent=1 // pred_region
      %s377 = ssub.s32 16, 16
      %378 = vsyncadd [#allocation11], %s377
      %s380 = sshll.u32 [#allocation10], 4
      %s381 = int_to_ptr.vmem [resolvable:$true] %s380
      %383 = dma.vmem_to_hbm [thread:$0]  %s381, 16, %s4, [#allocation11]
    $region33: #{tpu_custom_call.1} parent=1 // pred_fallthru
      _
    // Predicated region
    $region34: #{tpu_custom_call.1} parent=1 // pred_check
      _
    $region35: #{tpu_custom_call.1} parent=1 // pred_check_branch
      %385 = sbr.rel (0) target = $region37
    $region36: #{tpu_custom_call.1} parent=1 // pred_region
      %386 = dma.done [#allocation6], 16
    $region37: #{tpu_custom_call.1} parent=1 // pred_fallthru
      _
    // Predicated region
    $region38: #{tpu_custom_call.1} parent=1 // pred_check
      _
    $region39: #{tpu_custom_call.1} parent=1 // pred_check_branch
      %388 = sbr.rel (0) target = $region41
    $region40: #{tpu_custom_call.1} parent=1 // pred_region
      %389 = dma.done [#allocation11], 16
    $region41: #{tpu_custom_call.1} parent=1 // pred_fallthru
      _
    %390 = vsyncpa [#allocation5], 1
    %391 = vsyncpa [#allocation8], 1
    %392 = vsyncpa [#allocation6], 1
    %393 = vsyncpa [#allocation11], 1

</llo_original>
